<compile_context>
chip_gen: v5e
topology: v5e:2x2
jax: 0.10.0
libtpu: 0.0.40
codegen_flags: <defaults>
</compile_context>

<pallas_src>
import functools

import jax
import jax.numpy as jnp
from jax.experimental import pallas as pl
from jax.experimental.pallas import tpu as pltpu

HIDDEN = 32        # per-network hidden width (matches the PyTorch module)
H_PACK = 128       # packed critic|actor hidden, padded to a full lane width
OUT_PACK = 128     # packed value|logits output, padded to a full lane width
ONE_LANE = 2 * HIDDEN  # hidden lane carrying the constant 1 (for bias folding)


def _round_up(x: int, m: int) -> int:
    return (x + m - 1) // m * m


# --------------------------------------------------------------------------- #
# Kernel
# --------------------------------------------------------------------------- #
def _fused_a2c_kernel(x_ref, p_ref, out_ref, *, f_pad: int):
    """One batch tile: out = relu(relu(x@W1)@W2)@W3 (biases folded into W)."""
    off_w1 = 0
    off_w2 = off_w1 + f_pad
    off_w3 = off_w2 + H_PACK

    x = x_ref[...]                                       # (TM, f_pad)

    # Layer 1: [critic_w1 | actor_w1] side by side; bias row via ones column.
    w1 = p_ref[off_w1:off_w1 + f_pad, :]                 # (f_pad, 128)
    h = jnp.dot(x, w1, preferred_element_type=jnp.float32)
    h = jnp.maximum(h, 0.0)

    # Layer 2: block-diagonal [critic_w2, actor_w2]; bias row via constant lane.
    w2 = p_ref[off_w2:off_w2 + H_PACK, :]                # (128, 128)
    h = jnp.dot(h, w2, preferred_element_type=jnp.float32)
    h = jnp.maximum(h, 0.0)

    # Layer 3: block-diagonal -> [value | logits | zeros]; bias row folded in.
    w3 = p_ref[off_w3:off_w3 + H_PACK, :]                # (128, 128)
    out = jnp.dot(h, w3, preferred_element_type=jnp.float32)

    out_ref[...] = out.astype(out_ref.dtype)             # lane-dense store


# --------------------------------------------------------------------------- #
# Wrapper
# --------------------------------------------------------------------------- #
def pack_params(params, n_features: int, n_actions: int):
    """One-time packing of the 12 parameter tensors into one (rows, 128) f32
    buffer with block-diagonal critic/actor fusion and biases folded in."""
    assert 1 + n_actions <= OUT_PACK and ONE_LANE < H_PACK
    f_pad = _round_up(n_features + 1, 8)   # +1 for the constant-one feature
    rows = f_pad + H_PACK + H_PACK
    off_w1 = 0
    off_w2 = off_w1 + f_pad
    off_w3 = off_w2 + H_PACK

    H = HIDDEN
    P = jnp.zeros((rows, OUT_PACK), jnp.float32)
    # layer 1: [critic | actor] side by side on the hidden axis
    P = P.at[off_w1:off_w1 + n_features, 0:H].set(params["cw1"])
    P = P.at[off_w1:off_w1 + n_features, H:2 * H].set(params["aw1"])
    P = P.at[off_w1 + n_features, 0:H].set(params["cb1"].reshape(-1))
    P = P.at[off_w1 + n_features, H:2 * H].set(params["ab1"].reshape(-1))
    P = P.at[off_w1 + n_features, ONE_LANE].set(1.0)   # ones feature -> const lane
    # layer 2: block-diagonal, constant lane propagated
    P = P.at[off_w2:off_w2 + H, 0:H].set(params["cw2"])
    P = P.at[off_w2 + H:off_w2 + 2 * H, H:2 * H].set(params["aw2"])
    P = P.at[off_w2 + ONE_LANE, 0:H].set(params["cb2"].reshape(-1))
    P = P.at[off_w2 + ONE_LANE, H:2 * H].set(params["ab2"].reshape(-1))
    P = P.at[off_w2 + ONE_LANE, ONE_LANE].set(1.0)     # keep constant lane = 1
    # layer 3: block-diagonal onto [value | logits]
    P = P.at[off_w3:off_w3 + H, 0:1].set(params["cw3"])
    P = P.at[off_w3 + H:off_w3 + 2 * H, 1:1 + n_actions].set(params["aw3"])
    P = P.at[off_w3 + ONE_LANE, 0:1].set(params["cb3"].reshape(-1))
    P = P.at[off_w3 + ONE_LANE, 1:1 + n_actions].set(params["ab3"].reshape(-1))
    return P


def a2c_forward(x, packed_params, n_features: int, n_actions: int):
    """Fused A2C forward. Returns (state_values [n_envs, 1],
    action_logits [n_envs, n_actions]) — same as the PyTorch module."""
    n_envs = x.shape[0]
    f_pad = _round_up(n_features + 1, 8)

    # Batch tiling: small batches run as a single (8-aligned) tile; large RL
    # rollout batches stream in TM-row tiles across a "parallel" grid axis.
    m_pad = _round_up(max(n_envs, 1), 8)
    tm = m_pad if m_pad <= 512 else 512
    m_total = _round_up(m_pad, tm)
    grid = (m_total // tm,)

    # Zero-pad batch rows / feature columns once; ones column feeds the folded
    # biases inside the kernel.
    x_padded = jnp.zeros((m_total, f_pad), jnp.float32)
    x_padded = x_padded.at[:n_envs, :n_features].set(x.astype(jnp.float32))
    x_padded = x_padded.at[:, n_features].set(1.0)

    out = pl.pallas_call(
        functools.partial(_fused_a2c_kernel, f_pad=f_pad),
        out_shape=jax.ShapeDtypeStruct((m_total, OUT_PACK), jnp.float32),
        grid_spec=pltpu.PrefetchScalarGridSpec(
            num_scalar_prefetch=0,
            grid=grid,
            in_specs=[
                pl.BlockSpec((tm, f_pad), lambda i: (i, 0)),          # x tile
                pl.BlockSpec(packed_params.shape, lambda i: (0, 0)),  # params resident
            ],
            out_specs=pl.BlockSpec((tm, OUT_PACK), lambda i: (i, 0)),
        ),
        compiler_params=pltpu.CompilerParams(
            dimension_semantics=("parallel",),  # shards batch across TCs on v7x
        ),
    )(x_padded, packed_params)

    state_values = out[:n_envs, 0:1]
    action_logits = out[:n_envs, 1:1 + n_actions]
    return state_values, action_logits


# --------------------------------------------------------------------------- #
# Parameter init (shapes match the PyTorch module) + pure-JAX reference
# --------------------------------------------------------------------------- #
def init_params(key, n_features, n_actions, hidden=HIDDEN):
    """Weights stored as (in, out); biases stored as (1, out)."""
    keys = jax.random.split(key, 12)

    def lin(kw, kb, fan_in, fan_out):
        bound = 1.0 / jnp.sqrt(jnp.float32(fan_in))
        w = jax.random.uniform(kw, (fan_in, fan_out), jnp.float32, -bound, bound)
        b = jax.random.uniform(kb, (1, fan_out), jnp.float32, -bound, bound)
        return w, b

    cw1, cb1 = lin(keys[0], keys[1], n_features, hidden)
    cw2, cb2 = lin(keys[2], keys[3], hidden, hidden)
    cw3, cb3 = lin(keys[4], keys[5], hidden, 1)
    aw1, ab1 = lin(keys[6], keys[7], n_features, hidden)
    aw2, ab2 = lin(keys[8], keys[9], hidden, hidden)
    aw3, ab3 = lin(keys[10], keys[11], hidden, n_actions)
    return dict(
        cw1=cw1, cb1=cb1, cw2=cw2, cb2=cb2, cw3=cw3, cb3=cb3,
        aw1=aw1, ab1=ab1, aw2=aw2, ab2=ab2, aw3=aw3, ab3=ab3,
    )


def reference_forward(x, p):
    relu = lambda z: jnp.maximum(z, 0.0)
    h = relu(x @ p["cw1"] + p["cb1"])
    h = relu(h @ p["cw2"] + p["cb2"])
    v = h @ p["cw3"] + p["cb3"]
    a = relu(x @ p["aw1"] + p["ab1"])
    a = relu(a @ p["aw2"] + p["ab2"])
    logits = a @ p["aw3"] + p["ab3"]
    return v, logits


if __name__ == "__main__":
    n_envs = 10        # matches module default n_envs
    n_features = 8
    n_actions = 6

    key = jax.random.PRNGKey(0)
    k_x, k_p = jax.random.split(key)
    x = jax.random.normal(k_x, (n_envs, n_features), dtype=jnp.float32)
    params = init_params(k_p, n_features, n_actions)
    packed = pack_params(params, n_features, n_actions)

    state_values, action_logits = a2c_forward(x, packed, n_features, n_actions)
    jax.block_until_ready((state_values, action_logits))

    # correctness check against pure-JAX reference
    v_ref, l_ref = reference_forward(x, params)
    assert state_values.shape == (n_envs, 1)
    assert action_logits.shape == (n_envs, n_actions)
    assert jnp.allclose(state_values, v_ref, atol=1e-5, rtol=1e-5)
    assert jnp.allclose(action_logits, l_ref, atol=1e-5, rtol=1e-5)

    # TODO(synk): select_action sampling / GAE loss / RMSprop update are
    # training-loop utilities outside the module forward pass; not kernelized.
    print("KERNEL_OK")
</pallas_src>

<mosaic_0001>
module attributes {stable_mosaic.version = 11 : i64} {
  func.func @_fused_a2c_kernel(%arg0: i32, %arg1: memref<16x16xf32, #tpu.memory_space<vmem>>, %arg2: memref<272x128xf32, #tpu.memory_space<vmem>>, %arg3: memref<16x128xf32, #tpu.memory_space<vmem>>) attributes {dimension_semantics = [#tpu.dimension_semantics<parallel>], iteration_bounds = array<i64: 1>, scalar_prefetch = 0 : i64, scratch_operands = 0 : i64, tpu.core_type = #tpu.core_type<tc>, window_params = [{transform_indices = @transform_0, window_bounds = array<i64: 16, 16>}, {pipeline_mode = #tpu.pipeline_mode<synchronous>, transform_indices = @transform_1, window_bounds = array<i64: 272, 128>}, {transform_indices = @transform_2, window_bounds = array<i64: 16, 128>}]} {
    %c0 = arith.constant 0 : index
    %c0_0 = arith.constant 0 : index
    %0 = vector.load %arg1[%c0, %c0_0] : memref<16x16xf32, #tpu.memory_space<vmem>>, vector<16x16xf32>
    %c0_1 = arith.constant 0 : index
    %c0_2 = arith.constant 0 : index
    %1 = vector.load %arg2[%c0_1, %c0_2] : memref<272x128xf32, #tpu.memory_space<vmem>>, vector<16x128xf32>
    %cst = arith.constant dense<0.000000e+00> : vector<16x128xf32>
    %2 = tpu.matmul %0, %1, %cst {dimension_numbers = #tpu.dot_dimension_numbers<[1], [0], [0], [1], [0, 0, 1, 1], [], []>} : vector<16x16xf32>, vector<16x128xf32>, vector<16x128xf32> -> vector<16x128xf32>
    %cst_3 = arith.constant 0.000000e+00 : f32
    %3 = vector.broadcast %cst_3 : f32 to vector<16x128xf32>
    %4 = arith.maximumf %2, %3 : vector<16x128xf32>
    %c16 = arith.constant 16 : index
    %c0_4 = arith.constant 0 : index
    %5 = vector.load %arg2[%c16, %c0_4] : memref<272x128xf32, #tpu.memory_space<vmem>>, vector<128x128xf32>
    %cst_5 = arith.constant dense<0.000000e+00> : vector<16x128xf32>
    %6 = tpu.matmul %4, %5, %cst_5 {dimension_numbers = #tpu.dot_dimension_numbers<[1], [0], [0], [1], [0, 0, 1, 1], [], []>} : vector<16x128xf32>, vector<128x128xf32>, vector<16x128xf32> -> vector<16x128xf32>
    %cst_6 = arith.constant 0.000000e+00 : f32
    %7 = vector.broadcast %cst_6 : f32 to vector<16x128xf32>
    %8 = arith.maximumf %6, %7 : vector<16x128xf32>
    %c144 = arith.constant 144 : index
    %c0_7 = arith.constant 0 : index
    %9 = vector.load %arg2[%c144, %c0_7] : memref<272x128xf32, #tpu.memory_space<vmem>>, vector<128x128xf32>
    %cst_8 = arith.constant dense<0.000000e+00> : vector<16x128xf32>
    %10 = tpu.matmul %8, %9, %cst_8 {dimension_numbers = #tpu.dot_dimension_numbers<[1], [0], [0], [1], [0, 0, 1, 1], [], []>} : vector<16x128xf32>, vector<128x128xf32>, vector<16x128xf32> -> vector<16x128xf32>
    %c0_9 = arith.constant 0 : index
    %c0_10 = arith.constant 0 : index
    %11 = vector.load %arg3[%c0_9, %c0_10] : memref<16x128xf32, #tpu.memory_space<vmem>>, vector<16x128xf32>
    tpu.vector_store %arg3[%c0_9, %c0_10], %10 {strides = array<i32>} : memref<16x128xf32, #tpu.memory_space<vmem>>, vector<16x128xf32>,
    return
  }
  func.func @transform_0(%arg0: i32) -> (i32, i32) {
    %c0_i32 = arith.constant 0 : i32
    %c0_i32_0 = arith.constant 0 : i32
    return %arg0, %c0_i32 : i32, i32
  }
  func.func @transform_1(%arg0: i32) -> (i32, i32) {
    %c0_i32 = arith.constant 0 : i32
    %c0_i32_0 = arith.constant 0 : i32
    %c0_i32_1 = arith.constant 0 : i32
    return %c0_i32, %c0_i32_0 : i32, i32
  }
  func.func @transform_2(%arg0: i32) -> (i32, i32) {
    %c0_i32 = arith.constant 0 : i32
    %c0_i32_0 = arith.constant 0 : i32
    return %arg0, %c0_i32 : i32, i32
  }
}

</mosaic_0001>

<llo_original>
// kernel: tpu_custom_call.1
$region0: #{tpu_custom_call.1}
  #allocation0 [shape = 'u32[]', space=smem, size = 0x4, offset = 0x4, fixed_abs, tag = 'smem constant byte address 0x4 - core index']
  #allocation1 [shape = 'u32[72,128]{1,0:T(1,128)}', space=vmem, size = 0x9000, scoped, tag = 'internal scratch']
  %s0 = inlined_call_operand.hbm [shape: f32[16,16], index: 0, kind: input, shape index: {}]
  %s1 = inlined_call_operand.hbm [shape: f32[272,128], index: 1, kind: input, shape index: {}]
  %s2 = inlined_call_operand.hbm [shape: f32[16,128], index: 2, kind: output, shape index: {}]
  %s3 = sld [smem:[#allocation0]]
  $region26: #{tpu_custom_call.1} parent=0
    _
  %s5 = ssub.s32 1, %s3
  %s6 = scalar_select 0, %s5, %s3
  $region1: #{tpu_custom_call.1} parent=0
    #allocation2 [shape = 'u8[8192]{0}', space=vmem, size = 0x2000, scoped, tag = 'input window, operand 0, single buffered']
    #allocation3 [shape = 's32[1]{0}', space=sflag, size = 0x4, scoped, tag = 'scoped memory for tpu_custom_call.1']
    #allocation4 [shape = 's32[1]{0}', space=sflag, size = 0x4, scoped, tag = 'scoped memory for tpu_custom_call.1']
    #allocation5 [shape = 'u8[139264]{0}', space=vmem, size = 0x22000, scoped, tag = 'input window, operand 1, single buffered']
    #allocation6 [shape = 's32[1]{0}', space=sflag, size = 0x4, scoped, tag = 'scoped memory for tpu_custom_call.1']
    #allocation7 [shape = 'u8[8192]{0}', space=vmem, size = 0x2000, scoped, tag = 'output window, operand 0, single buffered']
    %7 = vsyncpa [#allocation3], 0
    %8 = vsyncpa [#allocation6], 0
    %9 = vsyncpa [#allocation4], 0
    // Predicated region
    $region2: #{tpu_custom_call.1} parent=1 // pred_check
      _
    $region3: #{tpu_custom_call.1} parent=1 // pred_check_branch
      %11 = sbr.rel (0) target = $region5
    $region4: #{tpu_custom_call.1} parent=1 // pred_region
      %13 = vsyncadd [#allocation3], 0
      %s14 = sshll.u32 %s0, 4
      %s15 = int_to_ptr.hbm [resolvable:$true] %s14
      %s16 = sshll.u32 [#allocation2], 4
      %s17 = int_to_ptr.vmem [resolvable:$true] %s16
      %22 = dma.hbm_to_vmem [thread:$0]  %s15, 256, %s17, [#allocation3], 128, 128, 8
    $region5: #{tpu_custom_call.1} parent=1 // pred_fallthru
      _
    // Predicated region
    $region6: #{tpu_custom_call.1} parent=1 // pred_check
      _
    $region7: #{tpu_custom_call.1} parent=1 // pred_check_branch
      %24 = sbr.rel (0) target = $region9
    $region8: #{tpu_custom_call.1} parent=1 // pred_region
      %26 = vsyncadd [#allocation6], 0
      %s27 = sshll.u32 %s1, 4
      %s28 = int_to_ptr.hbm [resolvable:$true] %s27
      %s29 = sshll.u32 [#allocation5], 4
      %s30 = int_to_ptr.vmem [resolvable:$true] %s29
      %35 = dma.hbm_to_vmem [thread:$0]  %s28, 4352, %s30, [#allocation6], 128, 128, 8
    $region9: #{tpu_custom_call.1} parent=1 // pred_fallthru
      _
    // Predicated region
    $region10: #{tpu_custom_call.1} parent=1 // pred_check
      _
    $region11: #{tpu_custom_call.1} parent=1 // pred_check_branch
      %37 = sbr.rel (0) target = $region13
    $region12: #{tpu_custom_call.1} parent=1 // pred_region
      %39 = dma.done [#allocation3], 256
    $region13: #{tpu_custom_call.1} parent=1 // pred_fallthru
      _
    // Predicated region
    $region14: #{tpu_custom_call.1} parent=1 // pred_check
      _
    $region15: #{tpu_custom_call.1} parent=1 // pred_check_branch
      %41 = sbr.rel (0) target = $region17
    $region16: #{tpu_custom_call.1} parent=1 // pred_region
      %43 = dma.done [#allocation6], 4352
    $region17: #{tpu_custom_call.1} parent=1 // pred_fallthru
      _
    %v44 = vld [vmem:[#allocation2] sm:$0xff]
    %v45 = vld [vmem:[#allocation2 + $0x8] sm:$0xff]
    %v46 = vld [vmem:[#allocation5] sm:$0xff]
    %v47 = vld [vmem:[#allocation5 + $0x8] sm:$0xff]
    %vm48 = vcmask 130048
    %v50 = vsel %vm48, %v44, 0
    %v53 = vsel %vm48, %v45, 0
    %55 = vmatpush.msra.mxu0 0.0
    %56 = vmatpush.msra.mxu0 0.0
    %57 = vmatpush.msra.mxu0 0.0
    %58 = vmatpush.msra.mxu0 0.0
    %59 = vmatpush.msra.mxu0 0.0
    %60 = vmatpush.msra.mxu0 0.0
    %61 = vmatpush.msra.mxu0 0.0
    %62 = vmatpush.msra.mxu0 0.0
    %63 = vmatpush.msra.mxu0 0.0
    %64 = vmatpush.msra.mxu0 0.0
    %65 = vmatpush.msra.mxu0 0.0
    %66 = vmatpush.msra.mxu0 0.0
    %67 = vmatpush.msra.mxu0 0.0
    %68 = vmatpush.msra.mxu0 0.0
    %69 = vmatpush.msra.mxu0 %v47
    %70 = vmatpush.msra.mxu0 %v46
    %71 = vmatmul.f32.gmra.mxu0 %v50
    %v72 = vpop.f32.mrf.mxu0
    %v73 = vadd.f32 0.0, %v72
    %74 = vmatmul.f32.gmra.mxu0 %v53
    %v75 = vpop.f32.mrf.mxu0
    %v76 = vadd.f32 0.0, %v75
    %77 = vdwg.mxu0
    %v78 = vmax.f32 %v73, 0.0
    %v79 = vmax.f32 %v76, 0.0
    %v80 = vld [vmem:[#allocation5 + $0x10] sm:$0xff]
    %v81 = vld [vmem:[#allocation5 + $0x18] sm:$0xff]
    %v82 = vld [vmem:[#allocation5 + $0x20] sm:$0xff]
    %v83 = vld [vmem:[#allocation5 + $0x28] sm:$0xff]
    %v84 = vld [vmem:[#allocation5 + $0x30] sm:$0xff]
    %v85 = vld [vmem:[#allocation5 + $0x38] sm:$0xff]
    %v86 = vld [vmem:[#allocation5 + $0x40] sm:$0xff]
    %v87 = vld [vmem:[#allocation5 + $0x48] sm:$0xff]
    %v88 = vld [vmem:[#allocation5 + $0x50] sm:$0xff]
    %v89 = vld [vmem:[#allocation5 + $0x58] sm:$0xff]
    %v90 = vld [vmem:[#allocation5 + $0x60] sm:$0xff]
    %v91 = vld [vmem:[#allocation5 + $0x68] sm:$0xff]
    %v92 = vld [vmem:[#allocation5 + $0x70] sm:$0xff]
    %v93 = vld [vmem:[#allocation5 + $0x78] sm:$0xff]
    %v94 = vld [vmem:[#allocation5 + $0x80] sm:$0xff]
    %v95 = vld [vmem:[#allocation5 + $0x88] sm:$0xff]
    %96 = vmatpush.msra.mxu0 %v95
    %97 = vmatpush.msra.mxu0 %v94
    %98 = vmatpush.msra.mxu0 %v93
    %99 = vmatpush.msra.mxu0 %v92
    %100 = vmatpush.msra.mxu0 %v91
    %101 = vmatpush.msra.mxu0 %v90
    %102 = vmatpush.msra.mxu0 %v89
    %103 = vmatpush.msra.mxu0 %v88
    %104 = vmatpush.msra.mxu0 %v87
    %105 = vmatpush.msra.mxu0 %v86
    %106 = vmatpush.msra.mxu0 %v85
    %107 = vmatpush.msra.mxu0 %v84
    %108 = vmatpush.msra.mxu0 %v83
    %109 = vmatpush.msra.mxu0 %v82
    %110 = vmatpush.msra.mxu0 %v81
    %111 = vmatpush.msra.mxu0 %v80
    %112 = vmatmul.f32.gmra.mxu0 %v78
    %v113 = vpop.f32.mrf.mxu0
    %v114 = vadd.f32 0.0, %v113
    %115 = vmatmul.f32.gmra.mxu0 %v79
    %v116 = vpop.f32.mrf.mxu0
    %v117 = vadd.f32 0.0, %v116
    %118 = vdwg.mxu0
    %v119 = vmax.f32 %v114, 0.0
    %v120 = vmax.f32 %v117, 0.0
    %v121 = vld [vmem:[#allocation5 + $0x90] sm:$0xff]
    %v122 = vld [vmem:[#allocation5 + $0x98] sm:$0xff]
    %v123 = vld [vmem:[#allocation5 + $0xa0] sm:$0xff]
    %v124 = vld [vmem:[#allocation5 + $0xa8] sm:$0xff]
    %v125 = vld [vmem:[#allocation5 + $0xb0] sm:$0xff]
    %v126 = vld [vmem:[#allocation5 + $0xb8] sm:$0xff]
    %v127 = vld [vmem:[#allocation5 + $0xc0] sm:$0xff]
    %v128 = vld [vmem:[#allocation5 + $0xc8] sm:$0xff]
    %v129 = vld [vmem:[#allocation5 + $0xd0] sm:$0xff]
    %v130 = vld [vmem:[#allocation5 + $0xd8] sm:$0xff]
    %v131 = vld [vmem:[#allocation5 + $0xe0] sm:$0xff]
    %v132 = vld [vmem:[#allocation5 + $0xe8] sm:$0xff]
    %v133 = vld [vmem:[#allocation5 + $0xf0] sm:$0xff]
    %v134 = vld [vmem:[#allocation5 + $0xf8] sm:$0xff]
    %v135 = vld [vmem:[#allocation5 + $0x100] sm:$0xff]
    %v136 = vld [vmem:[#allocation5 + $0x108] sm:$0xff]
    %137 = vmatpush.msra.mxu0 %v136
    %138 = vmatpush.msra.mxu0 %v135
    %139 = vmatpush.msra.mxu0 %v134
    %140 = vmatpush.msra.mxu0 %v133
    %141 = vmatpush.msra.mxu0 %v132
    %142 = vmatpush.msra.mxu0 %v131
    %143 = vmatpush.msra.mxu0 %v130
    %144 = vmatpush.msra.mxu0 %v129
    %145 = vmatpush.msra.mxu0 %v128
    %146 = vmatpush.msra.mxu0 %v127
    %147 = vmatpush.msra.mxu0 %v126
    %148 = vmatpush.msra.mxu0 %v125
    %149 = vmatpush.msra.mxu0 %v124
    %150 = vmatpush.msra.mxu0 %v123
    %151 = vmatpush.msra.mxu0 %v122
    %152 = vmatpush.msra.mxu0 %v121
    %153 = vmatmul.f32.gmra.mxu0 %v119
    %v154 = vpop.f32.mrf.mxu0
    %v155 = vadd.f32 0.0, %v154
    %156 = vmatmul.f32.gmra.mxu0 %v120
    %v157 = vpop.f32.mrf.mxu0
    %v158 = vadd.f32 0.0, %v157
    %159 = vdwg.mxu0
    %160 = vst [vmem:[#allocation7] sm:$0xff] %v155
    %161 = vst [vmem:[#allocation7 + $0x8] sm:$0xff] %v158
    // Predicated region
    $region18: #{tpu_custom_call.1} parent=1 // pred_check
      _
    $region19: #{tpu_custom_call.1} parent=1 // pred_check_branch
      %163 = sbr.rel (0) target = $region21
    $region20: #{tpu_custom_call.1} parent=1 // pred_region
      %165 = vsyncadd [#allocation4], 0
      %s166 = sshll.u32 [#allocation7], 4
      %s167 = int_to_ptr.vmem [resolvable:$true] %s166
      %s168 = sshll.u32 %s2, 4
      %s169 = int_to_ptr.hbm [resolvable:$true] %s168
      %174 = dma.vmem_to_hbm [thread:$0]  %s167, 256, %s169, [#allocation4], 128, 128, 8
    $region21: #{tpu_custom_call.1} parent=1 // pred_fallthru
      _
    // Predicated region
    $region22: #{tpu_custom_call.1} parent=1 // pred_check
      _
    $region23: #{tpu_custom_call.1} parent=1 // pred_check_branch
      %176 = sbr.rel (0) target = $region25
    $region24: #{tpu_custom_call.1} parent=1 // pred_region
      %178 = dma.done [#allocation4], 256
    $region25: #{tpu_custom_call.1} parent=1 // pred_fallthru
      _
    %179 = vsyncpa [#allocation3], 1
    %180 = vsyncpa [#allocation6], 1
    %181 = vsyncpa [#allocation4], 1

</llo_original>
